<compile_context>
chip_gen: v7x
topology: tpu7x:2x2x1
jax: 0.10.0
libtpu: 0.0.40
codegen_flags: <defaults>
</compile_context>

<pallas_src>
import jax
import jax.numpy as jnp
from jax.experimental import pallas as pl
from jax.experimental.pallas import tpu as pltpu

CONFIGS = {'veh_hidden': 16, 'req_hidden': 16, 'pas_hidden': 16, 'trip_hidden': 32}
D = CONFIGS['pas_hidden'] + CONFIGS['veh_hidden'] + CONFIGS['trip_hidden'] + CONFIGS['req_hidden']  # 80
DP = 128   # feature dim padded to one full lane width (lane-dense vregs + unmasked stores)


def _round_up(v, m):
    return (v + m - 1) // m * m


def req_add_att_kernel(src_ref, x_ref, w1_ref, w2_ref, out_ref):
    # src_ref : [1, M]     int32 block-local segment id per row (lb*s_pad + seg), -1 for pad rows
    # x_ref   : [M, 128]   features of Bt stacked instances (M = Bt*n_pad); column D is all-ones (b1 fold)
    # w1_ref  : [128, 128] padded Linear(D,D) weight ([in,out]); row D carries b1
    # w2_ref  : [1, 128]   padded Linear(D,1) weight (b2 dropped: cancels in softmax)
    # out_ref : [S_tot, 128]  stacked per-instance segment slabs (S_tot = Bt*s_pad)
    x = x_ref[...]

    # Linear(D,D) + b1 (folded via ones column) -> tanh.  One [M,128]x[128,128] MXU pass,
    # f32 accumulate regardless of the input matmul dtype.
    h = jnp.tanh(jnp.dot(x, w1_ref[...], preferred_element_type=jnp.float32))       # [M, 128]

    # Linear(D,1) produced directly in lane-major [1, M]: contract h's last dim against
    # w2 (q.k^T-style dot_general) - no [M,128] -> [128,M] transpose of h through the XLU.
    score = jax.lax.dot_general(w2_ref[...], h, (((1,), (1,)), ((), ())),
                                preferred_element_type=jnp.float32)                 # [1, M]

    S_tot = out_ref.shape[0]
    M = x.shape[0]
    seg_ids = jax.lax.broadcasted_iota(jnp.int32, (S_tot, M), 0)                    # [S_tot, M]
    mask = seg_ids == src_ref[...]                                                  # block-diagonal

    # Per-segment softmax in [S_tot, M] layout: lane reductions only.
    neg_big = jnp.float32(-1e30)
    seg_max = jnp.max(jnp.where(mask, score, neg_big), axis=1, keepdims=True)       # [S_tot, 1]
    e = jnp.where(mask, jnp.exp(score - seg_max), 0.0)                              # [S_tot, M]
    seg_sum = jnp.sum(e, axis=1, keepdims=True)                                     # [S_tot, 1]
    count = jnp.sum(jnp.where(mask, 1.0, 0.0), axis=1, keepdims=True)               # [S_tot, 1]

    # softmax normalisation and scatter_mean's 1/count folded into one tiny [S_tot,1]
    # reciprocal + multiply; empty / padded segments stay exactly zero.
    denom = jnp.maximum(seg_sum, jnp.float32(1e-30)) * jnp.maximum(count, 1.0)
    w = e * pl.reciprocal(denom, approx=False)                                      # [S_tot, M]

    # scatter_mean: one [S_tot,M]x[M,128] MXU contraction; full-lane unmasked store.
    out_ref[...] = jnp.dot(w.astype(x.dtype), x, preferred_element_type=jnp.float32)


def req_add_att(src, act_feat, w1, b1, w2, b2, num_segments, *,
                block_instances=8, matmul_dtype=jnp.float32):
    """Batched ReqAddAtt forward.

    src      : [B, N] int32 segment id per row; use -1 for padded / unused rows.
    act_feat : [B, N, 80] float32 candidate-action features.
    w1       : [80, 80] ([in, out] layout);  b1: [80];  w2: [80, 1];  b2: scalar.
               (b2 is accepted for API fidelity but unused: a constant shift cancels
                inside the per-segment softmax.)
    block_instances : problem instances stacked per grid step (auto-capped for VMEM).
    matmul_dtype    : jnp.float32 (default) or jnp.bfloat16 (v6e/v7x MXU fast path).
    Returns [B, num_segments, 80].
    """
    del b2  # shift-invariant under scatter_softmax
    src = jnp.asarray(src, jnp.int32)
    act_feat = jnp.asarray(act_feat, jnp.float32)
    B, N, d = act_feat.shape
    assert d == D and src.shape == (B, N)

    n_pad = _round_up(max(N, 8), 8)
    s_pad = _round_up(max(num_segments, 8), 8)

    # Cap the instance block so the x slab and the [S_tot, M] softmax intermediates stay
    # comfortably inside scoped VMEM on every generation (v7x: 64 MiB physical).
    bt = max(1, min(block_instances, B))
    while bt > 1 and (bt * n_pad * DP * 4 > (4 << 20) or
                      (bt * s_pad) * (bt * n_pad) * 4 > (4 << 20)):
        bt -= 1
    b_pad = _round_up(B, bt)
    nb = b_pad // bt
    M = bt * n_pad
    S_tot = bt * s_pad

    # Features: zero-pad to 128 lanes; column D is all ones so w1's row D adds b1.
    xp = jnp.zeros((b_pad, n_pad, DP), jnp.float32)
    xp = xp.at[:B, :N, :D].set(act_feat)
    xp = xp.at[:, :, D].set(1.0)
    xp = xp.reshape(nb, M, DP).astype(matmul_dtype)

    # Segment ids with per-block-local offsets (lb*s_pad); pad rows / dummy instances = -1.
    src_full = jnp.full((b_pad, n_pad), -1, jnp.int32)
    src_full = src_full.at[:B, :N].set(src)
    offs = (jnp.arange(b_pad, dtype=jnp.int32) % bt) * s_pad
    src_off = jnp.where(src_full >= 0, src_full + offs[:, None], -1)
    srcp = src_off.reshape(nb, 1, M)

    # Weights padded to 128 lanes; b1 folded into row D of w1; padded cols stay zero.
    w1p = (jnp.zeros((DP, DP), jnp.float32)
           .at[:D, :D].set(jnp.asarray(w1, jnp.float32))
           .at[D, :D].set(jnp.reshape(jnp.asarray(b1, jnp.float32), (D,)))
           ).astype(matmul_dtype)
    w2p = (jnp.zeros((1, DP), jnp.float32)
           .at[0, :D].set(jnp.reshape(jnp.asarray(w2, jnp.float32), (D,))))

    out = pl.pallas_call(
        req_add_att_kernel,
        out_shape=jax.ShapeDtypeStruct((nb, S_tot, DP), jnp.float32),
        grid=(nb,),
        in_specs=[
            pl.BlockSpec((None, 1, M), lambda b: (b, 0, 0)),     # src   (per instance block)
            pl.BlockSpec((None, M, DP), lambda b: (b, 0, 0)),    # feats (per instance block)
            pl.BlockSpec((DP, DP), lambda b: (0, 0)),            # w1    (resident)
            pl.BlockSpec((1, DP), lambda b: (0, 0)),             # w2    (resident)
        ],
        out_specs=pl.BlockSpec((None, S_tot, DP), lambda b: (b, 0, 0)),
        compiler_params=pltpu.CompilerParams(
            # On v7x, flip to pltpu.CORE_PARALLEL (and keep nb >= 2) to split instance
            # blocks across both TensorCores; "parallel" is a safe no-op on v5e/v6e.
            dimension_semantics=("parallel",)),
    )(srcp, xp, w1p, w2p)

    out = out.reshape(b_pad, s_pad, DP)
    return out[:B, :num_segments, :D]


def reference(src, act_feat, w1, b1, w2, b2, num_segments):
    """Pure-JAX reference of the torch forward (scatter_softmax + scatter_mean)."""
    h = jnp.tanh(act_feat @ w1 + b1)
    score = (h @ w2 + b2)[:, 0]                                       # [N]
    seg_max = jax.ops.segment_max(score, src, num_segments)
    e = jnp.exp(score - seg_max[src])
    seg_sum = jax.ops.segment_sum(e, src, num_segments)
    att = (e / seg_sum[src])[:, None]                                 # [N, 1]
    weighted = att * act_feat
    seg_out = jax.ops.segment_sum(weighted, src, num_segments)
    count = jax.ops.segment_sum(jnp.ones_like(score), src, num_segments)
    return seg_out / jnp.maximum(count, 1.0)[:, None]


if __name__ == "__main__":
    key = jax.random.PRNGKey(0)
    k_feat, k_w1, k_w2, k_b1 = jax.random.split(key, 4)

    B = 10              # problem instances -> 2 grid steps at block_instances=8
    S = 3               # segments (requests) per instance
    n_rows = [12, 9, 16, 5, 16, 7, 11, 3, 14, 10]    # real candidate rows per instance
    N_max = max(n_rows)                              # 16

    # Deterministic orthogonal init (gain sqrt(2)); non-zero biases to exercise the
    # bias-folding path (the module itself inits them to 0).
    ortho = jax.nn.initializers.orthogonal(scale=jnp.sqrt(2.0))
    w1 = ortho(k_w1, (D, D), jnp.float32)            # [in, out]
    w2 = ortho(k_w2, (D, 1), jnp.float32)            # [in, out]
    b1 = 0.1 * jax.random.normal(k_b1, (D,), jnp.float32)
    b2 = jnp.float32(0.3)

    act_feat = jax.random.normal(k_feat, (B, N_max, D), jnp.float32)

    rows = []
    for b, n in enumerate(n_rows):
        if b == 7:                    # 3-row instance with segment 2 left empty
            r = [0, 0, 1]
        else:
            r = [(i + b) % S for i in range(n)]
        rows.append(r + [-1] * (N_max - len(r)))
    src = jnp.array(rows, jnp.int32)

    out = req_add_att(src, act_feat, w1, b1, w2, b2, S, block_instances=8)
    out = jax.block_until_ready(out)
    assert out.shape == (B, S, D)

    for b in range(B):
        n = n_rows[b]
        ref_b = reference(src[b, :n], act_feat[b, :n], w1, b1, w2, b2, S)
        assert jnp.allclose(out[b], ref_b, atol=1e-4, rtol=1e-4), f"mismatch on instance {b}"

    print("KERNEL_OK")
</pallas_src>

<mosaic_0001>
module attributes {stable_mosaic.version = 11 : i64} {
  func.func @req_add_att_kernel(%arg0: i32, %arg1: memref<1x1x128xi32, #tpu.memory_space<vmem>>, %arg2: memref<1x128x128xf32, #tpu.memory_space<vmem>>, %arg3: memref<128x128xf32, #tpu.memory_space<vmem>>, %arg4: memref<1x128xf32, #tpu.memory_space<vmem>>, %arg5: memref<1x64x128xf32, #tpu.memory_space<vmem>>) attributes {dimension_semantics = [#tpu.dimension_semantics<parallel>], iteration_bounds = array<i64: 2>, scalar_prefetch = 0 : i64, scratch_operands = 0 : i64, tpu.core_type = #tpu.core_type<tc>, window_params = [{transform_indices = @transform_0, window_bounds = array<i64: 1, 1, 128>}, {transform_indices = @transform_1, window_bounds = array<i64: 1, 128, 128>}, {pipeline_mode = #tpu.pipeline_mode<synchronous>, transform_indices = @transform_2, window_bounds = array<i64: 128, 128>}, {pipeline_mode = #tpu.pipeline_mode<synchronous>, transform_indices = @transform_3, window_bounds = array<i64: 1, 128>}, {transform_indices = @transform_4, window_bounds = array<i64: 1, 64, 128>}]} {
    %c0 = arith.constant 0 : index
    %c0_0 = arith.constant 0 : index
    %c0_1 = arith.constant 0 : index
    %0 = vector.load %arg2[%c0, %c0_0, %c0_1] : memref<1x128x128xf32, #tpu.memory_space<vmem>>, vector<1x128x128xf32>
    %1 = vector.shape_cast %0 : vector<1x128x128xf32> to vector<128x128xf32>
    %c0_2 = arith.constant 0 : index
    %c0_3 = arith.constant 0 : index
    %2 = vector.load %arg3[%c0_2, %c0_3] : memref<128x128xf32, #tpu.memory_space<vmem>>, vector<128x128xf32>
    %cst = arith.constant dense<0.000000e+00> : vector<128x128xf32>
    %3 = tpu.matmul %1, %2, %cst {dimension_numbers = #tpu.dot_dimension_numbers<[1], [0], [0], [1], [0, 0, 1, 1], [], []>} : vector<128x128xf32>, vector<128x128xf32>, vector<128x128xf32> -> vector<128x128xf32>
    %4 = math.tanh %3 : vector<128x128xf32>
    %c0_4 = arith.constant 0 : index
    %c0_5 = arith.constant 0 : index
    %5 = vector.load %arg4[%c0_4, %c0_5] : memref<1x128xf32, #tpu.memory_space<vmem>>, vector<1x128xf32>
    %cst_6 = arith.constant dense<0.000000e+00> : vector<1x128xf32>
    %6 = tpu.matmul %5, %4, %cst_6 {dimension_numbers = #tpu.dot_dimension_numbers<[1], [1], [0], [0], [0, 0, 1, 0], [], []>} : vector<1x128xf32>, vector<128x128xf32>, vector<1x128xf32> -> vector<1x128xf32>
    %7 = tpu.iota {dimensions = array<i32: 0>} : vector<64x128xi32>
    %c0_7 = arith.constant 0 : index
    %c0_8 = arith.constant 0 : index
    %c0_9 = arith.constant 0 : index
    %8 = vector.load %arg1[%c0_7, %c0_8, %c0_9] : memref<1x1x128xi32, #tpu.memory_space<vmem>>, vector<1x1x128xi32>
    %9 = vector.shape_cast %8 : vector<1x1x128xi32> to vector<1x128xi32>
    %10 = vector.broadcast %9 : vector<1x128xi32> to vector<64x128xi32>
    %11 = arith.cmpi eq, %7, %10 : vector<64x128xi32>
    %cst_10 = arith.constant -1.000000e+30 : f32
    %12 = vector.shape_cast %6 : vector<1x128xf32> to vector<1x128xf32>
    %13 = vector.broadcast %12 : vector<1x128xf32> to vector<64x128xf32>
    %14 = vector.broadcast %cst_10 : f32 to vector<64x128xf32>
    %15 = arith.select %11, %13, %14 : vector<64x128xi1>, vector<64x128xf32>
    %cst_11 = arith.constant dense<0xFF800000> : vector<64xf32>
    %16 = vector.multi_reduction <maximumf>, %15, %cst_11 [1] : vector<64x128xf32> to vector<64xf32>
    %17 = vector.shape_cast %16 : vector<64xf32> to vector<64x1xf32>
    %18 = vector.broadcast %6 : vector<1x128xf32> to vector<64x128xf32>
    %19 = vector.broadcast %17 : vector<64x1xf32> to vector<64x128xf32>
    %20 = arith.subf %18, %19 : vector<64x128xf32>
    %21 = math.exp %20 : vector<64x128xf32>
    %cst_12 = arith.constant 0.000000e+00 : f32
    %22 = vector.broadcast %cst_12 : f32 to vector<64x128xf32>
    %23 = arith.select %11, %21, %22 : vector<64x128xi1>, vector<64x128xf32>
    %cst_13 = arith.constant dense<0.000000e+00> : vector<64xf32>
    %24 = vector.multi_reduction <add>, %23, %cst_13 [1] : vector<64x128xf32> to vector<64xf32>
    %25 = vector.shape_cast %24 : vector<64xf32> to vector<64x1xf32>
    %cst_14 = arith.constant 1.000000e+00 : f32
    %cst_15 = arith.constant 0.000000e+00 : f32
    %26 = vector.broadcast %cst_14 : f32 to vector<64x128xf32>
    %27 = vector.broadcast %cst_15 : f32 to vector<64x128xf32>
    %28 = arith.select %11, %26, %27 : vector<64x128xi1>, vector<64x128xf32>
    %cst_16 = arith.constant dense<0.000000e+00> : vector<64xf32>
    %29 = vector.multi_reduction <add>, %28, %cst_16 [1] : vector<64x128xf32> to vector<64xf32>
    %30 = vector.shape_cast %29 : vector<64xf32> to vector<64x1xf32>
    %cst_17 = arith.constant 1.000000e-30 : f32
    %31 = vector.broadcast %cst_17 : f32 to vector<64x1xf32>
    %32 = arith.maximumf %25, %31 : vector<64x1xf32>
    %cst_18 = arith.constant 1.000000e+00 : f32
    %33 = vector.broadcast %cst_18 : f32 to vector<64x1xf32>
    %34 = arith.maximumf %30, %33 : vector<64x1xf32>
    %35 = arith.mulf %32, %34 : vector<64x1xf32>
    %36 = tpu.reciprocal %35 : vector<64x1xf32> -> vector<64x1xf32>
    %37 = vector.broadcast %36 : vector<64x1xf32> to vector<64x128xf32>
    %38 = arith.mulf %23, %37 : vector<64x128xf32>
    %cst_19 = arith.constant dense<0.000000e+00> : vector<64x128xf32>
    %39 = tpu.matmul %38, %1, %cst_19 {dimension_numbers = #tpu.dot_dimension_numbers<[1], [0], [0], [1], [0, 0, 1, 1], [], []>} : vector<64x128xf32>, vector<128x128xf32>, vector<64x128xf32> -> vector<64x128xf32>
    %c0_20 = arith.constant 0 : index
    %c0_21 = arith.constant 0 : index
    %c0_22 = arith.constant 0 : index
    %40 = vector.load %arg5[%c0_20, %c0_21, %c0_22] : memref<1x64x128xf32, #tpu.memory_space<vmem>>, vector<1x64x128xf32>
    %41 = vector.shape_cast %40 : vector<1x64x128xf32> to vector<64x128xf32>
    %42 = vector.shape_cast %39 : vector<64x128xf32> to vector<1x64x128xf32>
    tpu.vector_store %arg5[%c0_20, %c0_21, %c0_22], %42 {strides = array<i32>} : memref<1x64x128xf32, #tpu.memory_space<vmem>>, vector<1x64x128xf32>,
    return
  }
  func.func @transform_0(%arg0: i32) -> (i32, i32, i32) {
    %c0_i32 = arith.constant 0 : i32
    %c0_i32_0 = arith.constant 0 : i32
    %c0_i32_1 = arith.constant 0 : i32
    return %arg0, %c0_i32, %c0_i32_0 : i32, i32, i32
  }
  func.func @transform_1(%arg0: i32) -> (i32, i32, i32) {
    %c0_i32 = arith.constant 0 : i32
    %c0_i32_0 = arith.constant 0 : i32
    %c0_i32_1 = arith.constant 0 : i32
    return %arg0, %c0_i32, %c0_i32_0 : i32, i32, i32
  }
  func.func @transform_2(%arg0: i32) -> (i32, i32) {
    %c0_i32 = arith.constant 0 : i32
    %c0_i32_0 = arith.constant 0 : i32
    %c0_i32_1 = arith.constant 0 : i32
    return %c0_i32, %c0_i32_0 : i32, i32
  }
  func.func @transform_3(%arg0: i32) -> (i32, i32) {
    %c0_i32 = arith.constant 0 : i32
    %c0_i32_0 = arith.constant 0 : i32
    %c0_i32_1 = arith.constant 0 : i32
    return %c0_i32, %c0_i32_0 : i32, i32
  }
  func.func @transform_4(%arg0: i32) -> (i32, i32, i32) {
    %c0_i32 = arith.constant 0 : i32
    %c0_i32_0 = arith.constant 0 : i32
    %c0_i32_1 = arith.constant 0 : i32
    return %arg0, %c0_i32, %c0_i32_0 : i32, i32, i32
  }
}

</mosaic_0001>

<llo_original>
// kernel: tpu_custom_call.1
$region0: #{tpu_custom_call.1}
  #allocation0 [shape = 'u32[]', space=smem, size = 0x4, offset = 0x4, fixed_abs, tag = 'smem constant byte address 0x4 - core index']
  #allocation1 [shape = 'u32[144,128]{1,0:T(1,128)}', space=vmem, size = 0x12000, scoped, tag = 'internal scratch']
  %s0 = inlined_call_operand.hbm [shape: s32[2,1,128], index: 0, kind: input, shape index: {}]
  %s1 = inlined_call_operand.hbm [shape: f32[2,128,128], index: 1, kind: input, shape index: {}]
  %s2 = inlined_call_operand.hbm [shape: f32[128,128], index: 2, kind: input, shape index: {}]
  %s3 = inlined_call_operand.vmem [shape: f32[1,128], index: 3, kind: input, shape index: {}]
  %s4 = inlined_call_operand.hbm [shape: f32[2,64,128], index: 4, kind: output, shape index: {}]
  %s5 = sld [smem:[#allocation0]]
  $region61: #{tpu_custom_call.1} parent=0
    _
  %s7 = ssub.s32 1, %s5
  %s8 = scalar_select 0, %s7, %s5
  $region1: #{tpu_custom_call.1} parent=0
    #allocation2 [shape = 'u8[1024]{0}', space=vmem, size = 0x400, scoped, tag = 'input window, operand 0']
    #allocation3 [shape = 's32[2]{0}', space=sflag, size = 0x8, scoped, tag = 'scoped memory for tpu_custom_call.1']
    #allocation4 [shape = 's32[2]{0}', space=sflag, size = 0x8, scoped, tag = 'scoped memory for tpu_custom_call.1']
    #allocation5 [shape = 'u8[131072]{0}', space=vmem, size = 0x20000, scoped, tag = 'input window, operand 1']
    #allocation6 [shape = 's32[2]{0}', space=sflag, size = 0x8, scoped, tag = 'scoped memory for tpu_custom_call.1']
    #allocation7 [shape = 'u8[65536]{0}', space=vmem, size = 0x10000, scoped, tag = 'input window, operand 2, single buffered']
    #allocation8 [shape = 'u8[65536]{0}', space=vmem, size = 0x10000, scoped, tag = 'output window, operand 0']
    %9 = vsyncpa [#allocation3], 0
    %s10 = scalar_lea.sflag [#allocation3], 1
    %11 = vsyncpa %s10, 0
    %12 = vsyncpa [#allocation6], 0
    %s13 = scalar_lea.sflag [#allocation6], 1
    %14 = vsyncpa %s13, 0
    %15 = vsyncpa [#allocation4], 0
    %s16 = scalar_lea.sflag [#allocation4], 1
    %17 = vsyncpa %s16, 0
    loop: start=0, step=1, limit=4
    $region2: #{tpu_custom_call.1} parent=1 // loop_pre_header
      _
    $region3: #{tpu_custom_call.1} parent=1 // loop_header
      %s19 = sphi 0, %s23
      %p20 = scmp.ge.s32.totalorder %s19, 4
      %s29 = sphi 0, %s31
      %s32 = sphi 0, %s29
      %s33 = sphi 0, %s32
      %s49 = sphi 0, %s33
      %s55 = sphi 0, %s57
      %s58 = sphi 0, %s55
      %s59 = sphi 0, %s58
      %s75 = sphi 0, %s59
      %s79 = sphi 0, %s79
      %s81 = sphi 0, %s79
      %s82 = sphi 0, %s81
      %s96 = sphi 0, %s82
      %s100 = sphi 0, %s100
      %s102 = sphi 0, %s100
      %s103 = sphi 0, %s102
      %s117 = sphi 0, %s103
      %s123 = sphi 0, %s125
      %s126 = sphi 0, %s123
      %s127 = sphi 0, %s126
      %s143 = sphi 0, %s127
    $region4: #{tpu_custom_call.1} parent=1 // loop_header_branch
      %22 = sbr.rel (%p20) target = $region8
    $region5: #{tpu_custom_call.1} parent=1 // loop_body
      %s24 = ssub.s32 %s19, 1
      %s25 = ssub.s32 %s19, 2
      %s26 = sadd.s32 %s19, 1
      %s27 = ssub.s32 %s19, %s26
      %p28 = scmp.eq.s32.totalorder %s27, 0
      %s30 = sadd.s32 %s29, 1
      %s31 = scalar_select %p28, %s29, %s30
      %p34 = pneg %p28
      %p35 = scmp.eq.s32.totalorder %s19, 1
      %p36 = por %p34, %p35
      %p37 = scmp.ne.s32.totalorder %s29, %s32
      %p38 = scmp.eq.s32.totalorder %s19, 0
      %p39 = por %p37, %p38
      %p40 = scmp.ne.s32.totalorder %s29, %s32
      %p41 = scmp.eq.s32.totalorder %s24, 1
      %p42 = por %p40, %p41
      %p43 = scmp.ne.s32.totalorder %s32, %s33
      %p44 = scmp.eq.s32.totalorder %s24, 0
      %p45 = por %p43, %p44
      %p46 = scmp.ne.s32.totalorder %s32, %s33
      %p47 = scmp.eq.s32.totalorder %s25, 1
      %p48 = por %p46, %p47
      %p50 = scmp.ne.s32.totalorder %s33, %s49
      %p51 = scmp.eq.s32.totalorder %s25, 0
      %p52 = por %p50, %p51
      %s53 = ssub.s32 %s19, %s26
      %p54 = scmp.eq.s32.totalorder %s53, 0
      %s56 = sadd.s32 %s55, 1
      %s57 = scalar_select %p54, %s55, %s56
      %p60 = pneg %p54
      %p61 = scmp.eq.s32.totalorder %s19, 1
      %p62 = por %p60, %p61
      %p63 = scmp.ne.s32.totalorder %s55, %s58
      %p64 = scmp.eq.s32.totalorder %s19, 0
      %p65 = por %p63, %p64
      %p66 = scmp.ne.s32.totalorder %s55, %s58
      %p67 = scmp.eq.s32.totalorder %s24, 1
      %p68 = por %p66, %p67
      %p69 = scmp.ne.s32.totalorder %s58, %s59
      %p70 = scmp.eq.s32.totalorder %s24, 0
      %p71 = por %p69, %p70
      %p72 = scmp.ne.s32.totalorder %s58, %s59
      %p73 = scmp.eq.s32.totalorder %s25, 1
      %p74 = por %p72, %p73
      %p76 = scmp.ne.s32.totalorder %s59, %s75
      %p77 = scmp.eq.s32.totalorder %s25, 0
      %p78 = por %p76, %p77
      %s80 = sadd.s32 %s79, 1
      %p83 = scmp.eq.s32.totalorder %s19, 1
      %p84 = scmp.ne.s32.totalorder %s79, %s81
      %p85 = scmp.eq.s32.totalorder %s19, 0
      %p86 = por %p84, %p85
      %p87 = scmp.ne.s32.totalorder %s79, %s81
      %p88 = scmp.eq.s32.totalorder %s24, 1
      %p89 = por %p87, %p88
      %p90 = scmp.ne.s32.totalorder %s81, %s82
      %p91 = scmp.eq.s32.totalorder %s24, 0
      %p92 = por %p90, %p91
      %p93 = scmp.ne.s32.totalorder %s81, %s82
      %p94 = scmp.eq.s32.totalorder %s25, 1
      %p95 = por %p93, %p94
      %p97 = scmp.ne.s32.totalorder %s82, %s96
      %p98 = scmp.eq.s32.totalorder %s25, 0
      %p99 = por %p97, %p98
      %s101 = sadd.s32 %s100, 1
      %p104 = scmp.eq.s32.totalorder %s19, 1
      %p105 = scmp.ne.s32.totalorder %s100, %s102
      %p106 = scmp.eq.s32.totalorder %s19, 0
      %p107 = por %p105, %p106
      %p108 = scmp.ne.s32.totalorder %s100, %s102
      %p109 = scmp.eq.s32.totalorder %s24, 1
      %p110 = por %p108, %p109
      %p111 = scmp.ne.s32.totalorder %s102, %s103
      %p112 = scmp.eq.s32.totalorder %s24, 0
      %p113 = por %p111, %p112
      %p114 = scmp.ne.s32.totalorder %s102, %s103
      %p115 = scmp.eq.s32.totalorder %s25, 1
      %p116 = por %p114, %p115
      %p118 = scmp.ne.s32.totalorder %s103, %s117
      %p119 = scmp.eq.s32.totalorder %s25, 0
      %p120 = por %p118, %p119
      %s121 = ssub.s32 %s19, %s26
      %p122 = scmp.eq.s32.totalorder %s121, 0
      %s124 = sadd.s32 %s123, 1
      %s125 = scalar_select %p122, %s123, %s124
      %p128 = pneg %p122
      %p129 = scmp.eq.s32.totalorder %s19, 1
      %p130 = por %p128, %p129
      %p131 = scmp.ne.s32.totalorder %s123, %s126
      %p132 = scmp.eq.s32.totalorder %s19, 0
      %p133 = por %p131, %p132
      %p134 = scmp.ne.s32.totalorder %s123, %s126
      %p135 = scmp.eq.s32.totalorder %s24, 1
      %p136 = por %p134, %p135
      %p137 = scmp.ne.s32.totalorder %s126, %s127
      %p138 = scmp.eq.s32.totalorder %s24, 0
      %p139 = por %p137, %p138
      %p140 = scmp.ne.s32.totalorder %s126, %s127
      %p141 = scmp.eq.s32.totalorder %s25, 1
      %p142 = por %p140, %p141
      %p144 = scmp.ne.s32.totalorder %s127, %s143
      %p145 = scmp.eq.s32.totalorder %s25, 0
      %p146 = por %p144, %p145
      %p147 = scmp.le.s32.totalorder 1, %s19
      %p148 = scmp.lt.s32.totalorder %s19, 3
      %p149 = pnand %p147, %p148
      %p150 = pneg %p149
      // Predicated region
      $region9: #{tpu_custom_call.1} parent=5 // pred_check
        _
      $region10: #{tpu_custom_call.1} parent=5 // pred_check_branch
        %152 = sbr.rel (%p149) target = $region12
      $region11: #{tpu_custom_call.1} parent=5 // pred_region
        %s153 = ssub.s32 %s19, 1
        // Predicated region
        $region13: #{tpu_custom_call.1} parent=11 // pred_check
          %p154 = pneg %p92
        $region14: #{tpu_custom_call.1} parent=11 // pred_check_branch
          %156 = sbr.rel (%p154) target = $region16
        $region15: #{tpu_custom_call.1} parent=11 // pred_region
          %s158 = ssub.s32 2048, 2048
          %159 = vsyncadd [#allocation6], %s158
          %s160 = sshll.u32 [#allocation7], 4
          %s161 = int_to_ptr.vmem [resolvable:$true] %s160
          %166 = dma.hbm_to_vmem [thread:$0]  %s2, 2048, %s161, [#allocation6], 128, 128, 8
        $region16: #{tpu_custom_call.1} parent=11 // pred_fallthru
          _
        // Predicated region
        $region17: #{tpu_custom_call.1} parent=11 // pred_check
          %p167 = pneg %p113
        $region18: #{tpu_custom_call.1} parent=11 // pred_check_branch
          %169 = sbr.rel (%p167) target = $region20
        $region19: #{tpu_custom_call.1} parent=11 // pred_region
          _
        $region20: #{tpu_custom_call.1} parent=11 // pred_fallthru
          _
      $region12: #{tpu_custom_call.1} parent=5 // pred_fallthru
        _
      %p170 = scmp.lt.s32.totalorder %s19, 2
      // Predicated region
      $region21: #{tpu_custom_call.1} parent=5 // pred_check
        %p171 = pneg %p170
      $region22: #{tpu_custom_call.1} parent=5 // pred_check_branch
        %173 = sbr.rel (%p171) target = $region24
      $region23: #{tpu_custom_call.1} parent=5 // pred_region
        // Predicated region
        $region25: #{tpu_custom_call.1} parent=23 // pred_check
          %p174 = pneg %p39
        $region26: #{tpu_custom_call.1} parent=23 // pred_check_branch
          %176 = sbr.rel (%p174) target = $region28
        $region27: #{tpu_custom_call.1} parent=23 // pred_region
          %s177 = sand.u32 %s29, 1
          %s178 = scalar_lea.sflag [#allocation3], %s177
          %s179 = sand.u32 %s29, 1
          %s180 = scalar_lea.vmem [#allocation2], %s179
          %s182 = ssub.s32 16, 16
          %183 = vsyncadd %s178, %s182
          %s184 = smul.addr %s19, 16
          %s185 = scalar_lea.hbm %s0, %s184
          %s187 = sshll.u32 %s180, 4
          %s188 = int_to_ptr.vmem [resolvable:$true] %s187
          %190 = dma.hbm_to_vmem [thread:$0]  %s185, 16, %s188, %s178
        $region28: #{tpu_custom_call.1} parent=23 // pred_fallthru
          _
        // Predicated region
        $region29: #{tpu_custom_call.1} parent=23 // pred_check
          %p191 = pneg %p65
        $region30: #{tpu_custom_call.1} parent=23 // pred_check_branch
          %193 = sbr.rel (%p191) target = $region32
        $region31: #{tpu_custom_call.1} parent=23 // pred_region
          %s194 = sand.u32 %s19, 1
          %s195 = scalar_lea.sflag [#allocation6], %s194
          %s196 = sand.u32 %s55, 1
          %s197 = smul.addr %s196, 128
          %s198 = scalar_lea.vmem [#allocation5], %s197
          %s200 = ssub.s32 2048, 2048
          %201 = vsyncadd %s195, %s200
          %s202 = smul.addr %s19, 16
          %s203 = smul.addr %s202, 128
          %s204 = scalar_lea.hbm %s1, %s203
          %s205 = sshll.u32 %s198, 4
          %s206 = int_to_ptr.vmem [resolvable:$true] %s205
          %211 = dma.hbm_to_vmem [thread:$0]  %s204, 2048, %s206, %s195, 128, 128, 8
        $region32: #{tpu_custom_call.1} parent=23 // pred_fallthru
          _
      $region24: #{tpu_custom_call.1} parent=5 // pred_fallthru
        _
      %p212 = scmp.le.s32.totalorder 1, %s19
      %p213 = scmp.lt.s32.totalorder %s19, 3
      %p214 = pnand %p212, %p213
      %p215 = pneg %p214
      // Predicated region
      $region33: #{tpu_custom_call.1} parent=5 // pred_check
        _
      $region34: #{tpu_custom_call.1} parent=5 // pred_check_branch
        %217 = sbr.rel (%p214) target = $region36
      $region35: #{tpu_custom_call.1} parent=5 // pred_region
        %s218 = ssub.s32 %s19, 1
        %s219 = sand.u32 %s32, 1
        %s220 = scalar_lea.sflag [#allocation3], %s219
        %s221 = sand.u32 %s32, 1
        %s222 = scalar_lea.vmem [#allocation2], %s221
        // Predicated region
        $region37: #{tpu_custom_call.1} parent=35 // pred_check
          %p223 = pneg %p45
        $region38: #{tpu_custom_call.1} parent=35 // pred_check_branch
          %225 = sbr.rel (%p223) target = $region40
        $region39: #{tpu_custom_call.1} parent=35 // pred_region
          %226 = dma.done %s220, 16
        $region40: #{tpu_custom_call.1} parent=35 // pred_fallthru
          _
        %s227 = sand.u32 %s24, 1
        %s228 = scalar_lea.sflag [#allocation6], %s227
        %s229 = sand.u32 %s58, 1
        %s230 = smul.addr %s229, 128
        %s231 = scalar_lea.vmem [#allocation5], %s230
        // Predicated region
        $region41: #{tpu_custom_call.1} parent=35 // pred_check
          %p232 = pneg %p71
        $region42: #{tpu_custom_call.1} parent=35 // pred_check_branch
          %234 = sbr.rel (%p232) target = $region44
        $region43: #{tpu_custom_call.1} parent=35 // pred_region
          %235 = dma.done %s228, 2048
        $region44: #{tpu_custom_call.1} parent=35 // pred_fallthru
          _
        // Predicated region
        $region45: #{tpu_custom_call.1} parent=35 // pred_check
          %p236 = pneg %p92
        $region46: #{tpu_custom_call.1} parent=35 // pred_check_branch
          %238 = sbr.rel (%p236) target = $region48
        $region47: #{tpu_custom_call.1} parent=35 // pred_region
          %239 = dma.done [#allocation6], 2048
        $region48: #{tpu_custom_call.1} parent=35 // pred_fallthru
          _
        %s240 = sand.u32 %s32, 1
        %s241 = scalar_lea.sflag [#allocation3], %s240
        %s242 = sand.u32 %s32, 1
        %s243 = scalar_lea.vmem [#allocation2], %s242
        %p244 = pneg %p45
        %p245 = pneg %p42
        %s246 = sand.u32 %s24, 1
        %s247 = scalar_lea.sflag [#allocation6], %s246
        %s248 = sand.u32 %s58, 1
        %s249 = smul.addr %s248, 128
        %s250 = scalar_lea.vmem [#allocation5], %s249
        %p251 = pneg %p71
        %p252 = pneg %p68
        %p253 = pneg %p92
        %p254 = pneg %p89
        %p255 = pneg %p113
        %p256 = pneg %p110
        %p257 = pneg %p139
        %p258 = pneg %p136
        %s259 = sand.u32 %s126, 1
        %s260 = scalar_lea.sflag [#allocation4], %s259
        %s261 = sand.u32 %s126, 1
        %s262 = smul.addr %s261, 64
        %s263 = scalar_lea.vmem [#allocation8], %s262
        %v264 = vld [vmem:[%s231] sm:$0xff]
        %v265 = vld [vmem:[%s231 + $0x8] sm:$0xff]
        %v266 = vld [vmem:[%s231 + $0x10] sm:$0xff]
        %v267 = vld [vmem:[%s231 + $0x18] sm:$0xff]
        %v268 = vld [vmem:[%s231 + $0x20] sm:$0xff]
        %v269 = vld [vmem:[%s231 + $0x28] sm:$0xff]
        %v270 = vld [vmem:[%s231 + $0x30] sm:$0xff]
        %v271 = vld [vmem:[%s231 + $0x38] sm:$0xff]
        %v272 = vld [vmem:[%s231 + $0x40] sm:$0xff]
        %v273 = vld [vmem:[%s231 + $0x48] sm:$0xff]
        %v274 = vld [vmem:[%s231 + $0x50] sm:$0xff]
        %v275 = vld [vmem:[%s231 + $0x58] sm:$0xff]
        %v276 = vld [vmem:[%s231 + $0x60] sm:$0xff]
        %v277 = vld [vmem:[%s231 + $0x68] sm:$0xff]
        %v278 = vld [vmem:[%s231 + $0x70] sm:$0xff]
        %v279 = vld [vmem:[%s231 + $0x78] sm:$0xff]
        %v280 = vld [vmem:[#allocation7] sm:$0xff]
        %v281 = vld [vmem:[#allocation7 + $0x8] sm:$0xff]
        %v282 = vld [vmem:[#allocation7 + $0x10] sm:$0xff]
        %v283 = vld [vmem:[#allocation7 + $0x18] sm:$0xff]
        %v284 = vld [vmem:[#allocation7 + $0x20] sm:$0xff]
        %v285 = vld [vmem:[#allocation7 + $0x28] sm:$0xff]
        %v286 = vld [vmem:[#allocation7 + $0x30] sm:$0xff]
        %v287 = vld [vmem:[#allocation7 + $0x38] sm:$0xff]
        %v288 = vld [vmem:[#allocation7 + $0x40] sm:$0xff]
        %v289 = vld [vmem:[#allocation7 + $0x48] sm:$0xff]
        %v290 = vld [vmem:[#allocation7 + $0x50] sm:$0xff]
        %v291 = vld [vmem:[#allocation7 + $0x58] sm:$0xff]
        %v292 = vld [vmem:[#allocation7 + $0x60] sm:$0xff]
        %v293 = vld [vmem:[#allocation7 + $0x68] sm:$0xff]
        %v294 = vld [vmem:[#allocation7 + $0x70] sm:$0xff]
        %v295 = vld [vmem:[#allocation7 + $0x78] sm:$0xff]
        %296 = vmatprep.subr.mxu0 0.0
        %297 = vmatpush1.msra.mxu0 %v280
        %298 = vmatprep.subr.mxu0 0.0
        %299 = vmatpush1.msra.mxu0 %v281
        %300 = vmatprep.subr.mxu0 0.0
        %301 = vmatpush1.msra.mxu0 %v282
        %302 = vmatprep.subr.mxu0 0.0
        %303 = vmatpush1.msra.mxu0 %v283
        %304 = vmatprep.subr.mxu0 0.0
        %305 = vmatpush1.msra.mxu0 %v284
        %306 = vmatprep.subr.mxu0 0.0
        %307 = vmatpush1.msra.mxu0 %v285
        %308 = vmatprep.subr.mxu0 0.0
        %309 = vmatpush1.msra.mxu0 %v286
        %310 = vmatprep.subr.mxu0 0.0
        %311 = vmatpush1.msra.mxu0 %v287
        %312 = vmatprep.subr.mxu0 0.0
        %313 = vmatpush1.msra.mxu0 %v288
        %314 = vmatprep.subr.mxu0 0.0
        %315 = vmatpush1.msra.mxu0 %v289
        %316 = vmatprep.subr.mxu0 0.0
        %317 = vmatpush1.msra.mxu0 %v290
        %318 = vmatprep.subr.mxu0 0.0
        %319 = vmatpush1.msra.mxu0 %v291
        %320 = vmatprep.subr.mxu0 0.0
        %321 = vmatpush1.msra.mxu0 %v292
        %322 = vmatprep.subr.mxu0 0.0
        %323 = vmatpush1.msra.mxu0 %v293
        %324 = vmatprep.subr.mxu0 0.0
        %325 = vmatpush1.msra.mxu0 %v294
        %326 = vmatprep.subr.mxu0 0.0
        %327 = vmatpush1.msra.mxu0 %v295
        %328 = vmatprep.subr.mxu0 0.0
        %329 = vmatpush1.msra.mxu0 0.0
        %330 = vmatprep.subr.mxu0 0.0
        %331 = vmatpush1.msra.mxu0 0.0
        %332 = vmatprep.subr.mxu0 0.0
        %333 = vmatpush1.msra.mxu0 0.0
        %334 = vmatprep.subr.mxu0 0.0
        %335 = vmatpush1.msra.mxu0 0.0
        %336 = vmatprep.subr.mxu0 0.0
        %337 = vmatpush1.msra.mxu0 0.0
        %338 = vmatprep.subr.mxu0 0.0
        %339 = vmatpush1.msra.mxu0 0.0
        %340 = vmatprep.subr.mxu0 0.0
        %341 = vmatpush1.msra.mxu0 0.0
        %342 = vmatprep.subr.mxu0 0.0
        %343 = vmatpush1.msra.mxu0 0.0
        %344 = vmatprep.subr.mxu0 0.0
        %345 = vmatpush1.msra.mxu0 0.0
        %346 = vmatprep.subr.mxu0 0.0
        %347 = vmatpush1.msra.mxu0 0.0
        %348 = vmatprep.subr.mxu0 0.0
        %349 = vmatpush1.msra.mxu0 0.0
        %350 = vmatprep.subr.mxu0 0.0
        %351 = vmatpush1.msra.mxu0 0.0
        %352 = vmatprep.subr.mxu0 0.0
        %353 = vmatpush1.msra.mxu0 0.0
        %354 = vmatprep.subr.mxu0 0.0
        %355 = vmatpush1.msra.mxu0 0.0
        %356 = vmatprep.subr.mxu0 0.0
        %357 = vmatpush1.msra.mxu0 0.0
        %358 = vmatprep.subr.mxu0 0.0
        %359 = vmatpush1.msra.mxu0 0.0
        %360 = vmatprep.mubr.f32.mxu0 0.0
        %361 = vmatmul.mubr.f32.gmra.mrb[0].mxu0 %v264
        %v362 = vpop.f32.mrb[0].mxu0
        %v363 = vadd.f32 0.0, %v362
        %v364 = vpop.f32.mrb[0].mxu0
        %365 = vmatprep.mubr.f32.mxu0 0.0
        %366 = vmatmul.mubr.f32.gmra.mrb[0].mxu0 %v265
        %v367 = vpop.f32.mrb[0].mxu0
        %v368 = vadd.f32 0.0, %v367
        %v369 = vpop.f32.mrb[0].mxu0
        %370 = vmatprep.mubr.f32.mxu0 0.0
        %371 = vmatmul.mubr.f32.gmra.mrb[0].mxu0 %v266
        %v372 = vpop.f32.mrb[0].mxu0
        %v373 = vadd.f32 0.0, %v372
        %v374 = vpop.f32.mrb[0].mxu0
        %375 = vmatprep.mubr.f32.mxu0 0.0
        %376 = vmatmul.mubr.f32.gmra.mrb[0].mxu0 %v267
        %v377 = vpop.f32.mrb[0].mxu0
        %v378 = vadd.f32 0.0, %v377
        %v379 = vpop.f32.mrb[0].mxu0
        %380 = vmatprep.mubr.f32.mxu0 0.0
        %381 = vmatmul.mubr.f32.gmra.mrb[0].mxu0 %v268
        %v382 = vpop.f32.mrb[0].mxu0
        %v383 = vadd.f32 0.0, %v382
        %v384 = vpop.f32.mrb[0].mxu0
        %385 = vmatprep.mubr.f32.mxu0 0.0
        %386 = vmatmul.mubr.f32.gmra.mrb[0].mxu0 %v269
        %v387 = vpop.f32.mrb[0].mxu0
        %v388 = vadd.f32 0.0, %v387
        %v389 = vpop.f32.mrb[0].mxu0
        %390 = vmatprep.mubr.f32.mxu0 0.0
        %391 = vmatmul.mubr.f32.gmra.mrb[0].mxu0 %v270
        %v392 = vpop.f32.mrb[0].mxu0
        %v393 = vadd.f32 0.0, %v392
        %v394 = vpop.f32.mrb[0].mxu0
        %395 = vmatprep.mubr.f32.mxu0 0.0
        %396 = vmatmul.mubr.f32.gmra.mrb[0].mxu0 %v271
        %v397 = vpop.f32.mrb[0].mxu0
        %v398 = vadd.f32 0.0, %v397
        %v399 = vpop.f32.mrb[0].mxu0
        %400 = vmatprep.mubr.f32.mxu0 0.0
        %401 = vmatmul.mubr.f32.gmra.mrb[0].mxu0 %v272
        %v402 = vpop.f32.mrb[0].mxu0
        %v403 = vadd.f32 0.0, %v402
        %v404 = vpop.f32.mrb[0].mxu0
        %405 = vmatprep.mubr.f32.mxu0 0.0
        %406 = vmatmul.mubr.f32.gmra.mrb[0].mxu0 %v273
        %v407 = vpop.f32.mrb[0].mxu0
        %v408 = vadd.f32 0.0, %v407
        %v409 = vpop.f32.mrb[0].mxu0
        %410 = vmatprep.mubr.f32.mxu0 0.0
        %411 = vmatmul.mubr.f32.gmra.mrb[0].mxu0 %v274
        %v412 = vpop.f32.mrb[0].mxu0
        %v413 = vadd.f32 0.0, %v412
        %v414 = vpop.f32.mrb[0].mxu0
        %415 = vmatprep.mubr.f32.mxu0 0.0
        %416 = vmatmul.mubr.f32.gmra.mrb[0].mxu0 %v275
        %v417 = vpop.f32.mrb[0].mxu0
        %v418 = vadd.f32 0.0, %v417
        %v419 = vpop.f32.mrb[0].mxu0
        %420 = vmatprep.mubr.f32.mxu0 0.0
        %421 = vmatmul.mubr.f32.gmra.mrb[0].mxu0 %v276
        %v422 = vpop.f32.mrb[0].mxu0
        %v423 = vadd.f32 0.0, %v422
        %v424 = vpop.f32.mrb[0].mxu0
        %425 = vmatprep.mubr.f32.mxu0 0.0
        %426 = vmatmul.mubr.f32.gmra.mrb[0].mxu0 %v277
        %v427 = vpop.f32.mrb[0].mxu0
        %v428 = vadd.f32 0.0, %v427
        %v429 = vpop.f32.mrb[0].mxu0
        %430 = vmatprep.mubr.f32.mxu0 0.0
        %431 = vmatmul.mubr.f32.gmra.mrb[0].mxu0 %v278
        %v432 = vpop.f32.mrb[0].mxu0
        %v433 = vadd.f32 0.0, %v432
        %v434 = vpop.f32.mrb[0].mxu0
        %435 = vmatprep.mubr.f32.mxu0 0.0
        %436 = vmatmul.mubr.f32.gmra.mrb[0].mxu0 %v279
        %v437 = vpop.f32.mrb[0].mxu0
        %v438 = vadd.f32 0.0, %v437
        %v439 = vpop.f32.mrb[0].mxu0
        %440 = vdwg.mxu0
        %v441 = vtanh.pop %v363
        %v442 = vtanh.pop %v368
        %v443 = vtanh.pop %v373
        %v444 = vtanh.pop %v378
        %v445 = vtanh.pop %v383
        %v446 = vtanh.pop %v388
        %v447 = vtanh.pop %v393
        %v448 = vtanh.pop %v398
        %v449 = vtanh.pop %v403
        %v450 = vtanh.pop %v408
        %v451 = vtanh.pop %v413
        %v452 = vtanh.pop %v418
        %v453 = vtanh.pop %v423
        %v454 = vtanh.pop %v428
        %v455 = vtanh.pop %v433
        %v456 = vtanh.pop %v438
        %v457 = vld [vmem:[%s3] sm:$0x1]
        %458 = vmatprep.subr.mxu0 0.0
        %459 = vmatpush1.xpose.msra.mxu0 %v441
        %460 = vmatprep.subr.mxu0 0.0
        %461 = vmatpush1.xpose.msra.mxu0 %v442
        %462 = vmatprep.subr.mxu0 0.0
        %463 = vmatpush1.xpose.msra.mxu0 %v443
        %464 = vmatprep.subr.mxu0 0.0
        %465 = vmatpush1.xpose.msra.mxu0 %v444
        %466 = vmatprep.subr.mxu0 0.0
        %467 = vmatpush1.xpose.msra.mxu0 %v445
        %468 = vmatprep.subr.mxu0 0.0
        %469 = vmatpush1.xpose.msra.mxu0 %v446
        %470 = vmatprep.subr.mxu0 0.0
        %471 = vmatpush1.xpose.msra.mxu0 %v447
        %472 = vmatprep.subr.mxu0 0.0
        %473 = vmatpush1.xpose.msra.mxu0 %v448
        %474 = vmatprep.subr.mxu0 0.0
        %475 = vmatpush1.xpose.msra.mxu0 %v449
        %476 = vmatprep.subr.mxu0 0.0
        %477 = vmatpush1.xpose.msra.mxu0 %v450
        %478 = vmatprep.subr.mxu0 0.0
        %479 = vmatpush1.xpose.msra.mxu0 %v451
        %480 = vmatprep.subr.mxu0 0.0
        %481 = vmatpush1.xpose.msra.mxu0 %v452
        %482 = vmatprep.subr.mxu0 0.0
        %483 = vmatpush1.xpose.msra.mxu0 %v453
        %484 = vmatprep.subr.mxu0 0.0
        %485 = vmatpush1.xpose.msra.mxu0 %v454
        %486 = vmatprep.subr.mxu0 0.0
        %487 = vmatpush1.xpose.msra.mxu0 %v455
        %488 = vmatprep.subr.mxu0 0.0
        %489 = vmatpush1.xpose.msra.mxu0 %v456
        %490 = vmatprep.subr.mxu0 0.0
        %491 = vmatpush1.xpose.msra.mxu0 0.0
        %492 = vmatprep.subr.mxu0 0.0
        %493 = vmatpush1.xpose.msra.mxu0 0.0
        %494 = vmatprep.subr.mxu0 0.0
        %495 = vmatpush1.xpose.msra.mxu0 0.0
        %496 = vmatprep.subr.mxu0 0.0
        %497 = vmatpush1.xpose.msra.mxu0 0.0
        %498 = vmatprep.subr.mxu0 0.0
        %499 = vmatpush1.xpose.msra.mxu0 0.0
        %500 = vmatprep.subr.mxu0 0.0
        %501 = vmatpush1.xpose.msra.mxu0 0.0
        %502 = vmatprep.subr.mxu0 0.0
        %503 = vmatpush1.xpose.msra.mxu0 0.0
        %504 = vmatprep.subr.mxu0 0.0
        %505 = vmatpush1.xpose.msra.mxu0 0.0
        %506 = vmatprep.subr.mxu0 0.0
        %507 = vmatpush1.xpose.msra.mxu0 0.0
        %508 = vmatprep.subr.mxu0 0.0
        %509 = vmatpush1.xpose.msra.mxu0 0.0
        %510 = vmatprep.subr.mxu0 0.0
        %511 = vmatpush1.xpose.msra.mxu0 0.0
        %512 = vmatprep.subr.mxu0 0.0
        %513 = vmatpush1.xpose.msra.mxu0 0.0
        %514 = vmatprep.subr.mxu0 0.0
        %515 = vmatpush1.xpose.msra.mxu0 0.0
        %516 = vmatprep.subr.mxu0 0.0
        %517 = vmatpush1.xpose.msra.mxu0 0.0
        %518 = vmatprep.subr.mxu0 0.0
        %519 = vmatpush1.xpose.msra.mxu0 0.0
        %520 = vmatprep.subr.mxu0 0.0
        %521 = vmatpush1.xpose.msra.mxu0 0.0
        %522 = vmatprep.mubr.f32.mxu0 0.0
        %523 = vmatmul.mubr.f32.gmra.mrb[0].mxu0 %v457
        %v524 = vpop.f32.mrb[0].mxu0
        %v525 = vadd.f32 0.0, %v524
        %v526 = vpop.f32.mrb[0].mxu0
        %527 = vdwg.mxu0
        %v528 = vlaneseq
        %v529 = vshrl.u32 %v528, 7
        %v530 = vadd.s32 %v529, 8
        %v531 = vadd.s32 %v529, 16
        %v532 = vadd.s32 %v529, 24
        %v533 = vadd.s32 %v529, 32
        %v534 = vadd.s32 %v529, 40
        %v535 = vadd.s32 %v529, 48
        %v536 = vadd.s32 %v529, 56
        %v537 = vld [vmem:[%s222] sm:$0x1]
        %v538 = vlaneseq
        %v539 = vshrl.u32 %v538, 7
        %v540 = vsub.s32 0, %v539
        %v541 = vrot.slane %v537, %v540
        %vm542 = vcmp.eq.s32.totalorder %v529, %v541
        %vm543 = vcmp.eq.s32.totalorder %v530, %v541
        %vm544 = vcmp.eq.s32.totalorder %v531, %v541
        %vm545 = vcmp.eq.s32.totalorder %v532, %v541
        %vm546 = vcmp.eq.s32.totalorder %v533, %v541
        %vm547 = vcmp.eq.s32.totalorder %v534, %v541
        %vm548 = vcmp.eq.s32.totalorder %v535, %v541
        %vm549 = vcmp.eq.s32.totalorder %v536, %v541
        %v550 = vlaneseq
        %v551 = vshrl.u32 %v550, 7
        %v552 = vsub.s32 0, %v551
        %v553 = vrot.slane %v525, %v552
        %v554 = vsel %vm542, %v553, -1e+30
        %v555 = vsel %vm543, %v553, -1e+30
        %v556 = vsel %vm544, %v553, -1e+30
        %v557 = vsel %vm545, %v553, -1e+30
        %v558 = vsel %vm546, %v553, -1e+30
        %v559 = vsel %vm547, %v553, -1e+30
        %v560 = vsel %vm548, %v553, -1e+30
        %v561 = vsel %vm549, %v553, -1e+30
        %562 = vmax.xlane.f32.xlu0 %v554
        %v563 = vpop.xlane.xlu0 %562
        %564 = vmax.xlane.f32.xlu0 %v555
        %v565 = vpop.xlane.xlu0 %564
        %566 = vmax.xlane.f32.xlu0 %v556
        %v567 = vpop.xlane.xlu0 %566
        %568 = vmax.xlane.f32.xlu0 %v557
        %v569 = vpop.xlane.xlu0 %568
        %570 = vmax.xlane.f32.xlu0 %v558
        %v571 = vpop.xlane.xlu0 %570
        %572 = vmax.xlane.f32.xlu0 %v559
        %v573 = vpop.xlane.xlu0 %572
        %574 = vmax.xlane.f32.xlu0 %v560
        %v575 = vpop.xlane.xlu0 %574
        %576 = vmax.xlane.f32.xlu0 %v561
        %v577 = vpop.xlane.xlu0 %576
        %v578 = vsub.f32 %v553, %v563
        %v579 = vsub.f32 %v553, %v565
        %v580 = vsub.f32 %v553, %v567
        %v581 = vsub.f32 %v553, %v569
        %v582 = vsub.f32 %v553, %v571
        %v583 = vsub.f32 %v553, %v573
        %v584 = vsub.f32 %v553, %v575
        %v585 = vsub.f32 %v553, %v577
        %v586 = vmul.f32 %v578, 1.442695
        %v587 = vpow.pop %v586
        %v588 = vmul.f32 %v579, 1.442695
        %v589 = vpow.pop %v588
        %v590 = vmul.f32 %v580, 1.442695
        %v591 = vpow.pop %v590
        %v592 = vmul.f32 %v581, 1.442695
        %v593 = vpow.pop %v592
        %v594 = vmul.f32 %v582, 1.442695
        %v595 = vpow.pop %v594
        %v596 = vmul.f32 %v583, 1.442695
        %v597 = vpow.pop %v596
        %v598 = vmul.f32 %v584, 1.442695
        %v599 = vpow.pop %v598
        %v600 = vmul.f32 %v585, 1.442695
        %v601 = vpow.pop %v600
        %v602 = vsel %vm542, %v587, 0.0
        %v603 = vsel %vm543, %v589, 0.0
        %v604 = vsel %vm544, %v591, 0.0
        %v605 = vsel %vm545, %v593, 0.0
        %v606 = vsel %vm546, %v595, 0.0
        %v607 = vsel %vm547, %v597, 0.0
        %v608 = vsel %vm548, %v599, 0.0
        %v609 = vsel %vm549, %v601, 0.0
        %610 = vadd.xlane.f32.xlu0 %v602
        %v611 = vpop.xlane.xlu0 %610
        %612 = vadd.xlane.f32.xlu0 %v603
        %v613 = vpop.xlane.xlu0 %612
        %614 = vadd.xlane.f32.xlu0 %v604
        %v615 = vpop.xlane.xlu0 %614
        %616 = vadd.xlane.f32.xlu0 %v605
        %v617 = vpop.xlane.xlu0 %616
        %618 = vadd.xlane.f32.xlu0 %v606
        %v619 = vpop.xlane.xlu0 %618
        %620 = vadd.xlane.f32.xlu0 %v607
        %v621 = vpop.xlane.xlu0 %620
        %622 = vadd.xlane.f32.xlu0 %v608
        %v623 = vpop.xlane.xlu0 %622
        %624 = vadd.xlane.f32.xlu0 %v609
        %v625 = vpop.xlane.xlu0 %624
        %v626 = vsel %vm542, 1.0, 0.0
        %v627 = vsel %vm543, 1.0, 0.0
        %v628 = vsel %vm544, 1.0, 0.0
        %v629 = vsel %vm545, 1.0, 0.0
        %v630 = vsel %vm546, 1.0, 0.0
        %v631 = vsel %vm547, 1.0, 0.0
        %v632 = vsel %vm548, 1.0, 0.0
        %v633 = vsel %vm549, 1.0, 0.0
        %634 = vadd.xlane.f32.xlu0 %v626
        %v635 = vpop.xlane.xlu0 %634
        %636 = vadd.xlane.f32.xlu0 %v627
        %v637 = vpop.xlane.xlu0 %636
        %638 = vadd.xlane.f32.xlu0 %v628
        %v639 = vpop.xlane.xlu0 %638
        %640 = vadd.xlane.f32.xlu0 %v629
        %v641 = vpop.xlane.xlu0 %640
        %642 = vadd.xlane.f32.xlu0 %v630
        %v643 = vpop.xlane.xlu0 %642
        %644 = vadd.xlane.f32.xlu0 %v631
        %v645 = vpop.xlane.xlu0 %644
        %646 = vadd.xlane.f32.xlu0 %v632
        %v647 = vpop.xlane.xlu0 %646
        %648 = vadd.xlane.f32.xlu0 %v633
        %v649 = vpop.xlane.xlu0 %648
        %v650 = vmax.f32 %v611, 1e-30
        %v651 = vmax.f32 %v613, 1e-30
        %v652 = vmax.f32 %v615, 1e-30
        %v653 = vmax.f32 %v617, 1e-30
        %v654 = vmax.f32 %v619, 1e-30
        %v655 = vmax.f32 %v621, 1e-30
        %v656 = vmax.f32 %v623, 1e-30
        %v657 = vmax.f32 %v625, 1e-30
        %v658 = vmax.f32 %v635, 1.0
        %v659 = vmax.f32 %v637, 1.0
        %v660 = vmax.f32 %v639, 1.0
        %v661 = vmax.f32 %v641, 1.0
        %v662 = vmax.f32 %v643, 1.0
        %v663 = vmax.f32 %v645, 1.0
        %v664 = vmax.f32 %v647, 1.0
        %v665 = vmax.f32 %v649, 1.0
        %v666 = vmul.f32 %v650, %v658
        %v667 = vmul.f32 %v651, %v659
        %v668 = vmul.f32 %v652, %v660
        %v669 = vmul.f32 %v653, %v661
        %v670 = vmul.f32 %v654, %v662
        %v671 = vmul.f32 %v655, %v663
        %v672 = vmul.f32 %v656, %v664
        %v673 = vmul.f32 %v657, %v665
        %v674 = vrcp.pop %v666
        %v675 = vrcp.pop %v667
        %v676 = vrcp.pop %v668
        %v677 = vrcp.pop %v669
        %v678 = vrcp.pop %v670
        %v679 = vrcp.pop %v671
        %v680 = vrcp.pop %v672
        %v681 = vrcp.pop %v673
        %v682 = vmul.f32 %v602, %v674
        %v683 = vmul.f32 %v603, %v675
        %v684 = vmul.f32 %v604, %v676
        %v685 = vmul.f32 %v605, %v677
        %v686 = vmul.f32 %v606, %v678
        %v687 = vmul.f32 %v607, %v679
        %v688 = vmul.f32 %v608, %v680
        %v689 = vmul.f32 %v609, %v681
        %690 = vmatprep.subr.mxu0 0.0
        %691 = vmatpush1.msra.mxu0 %v264
        %692 = vmatprep.subr.mxu0 0.0
        %693 = vmatpush1.msra.mxu0 %v265
        %694 = vmatprep.subr.mxu0 0.0
        %695 = vmatpush1.msra.mxu0 %v266
        %696 = vmatprep.subr.mxu0 0.0
        %697 = vmatpush1.msra.mxu0 %v267
        %698 = vmatprep.subr.mxu0 0.0
        %699 = vmatpush1.msra.mxu0 %v268
        %700 = vmatprep.subr.mxu0 0.0
        %701 = vmatpush1.msra.mxu0 %v269
        %702 = vmatprep.subr.mxu0 0.0
        %703 = vmatpush1.msra.mxu0 %v270
        %704 = vmatprep.subr.mxu0 0.0
        %705 = vmatpush1.msra.mxu0 %v271
        %706 = vmatprep.subr.mxu0 0.0
        %707 = vmatpush1.msra.mxu0 %v272
        %708 = vmatprep.subr.mxu0 0.0
        %709 = vmatpush1.msra.mxu0 %v273
        %710 = vmatprep.subr.mxu0 0.0
        %711 = vmatpush1.msra.mxu0 %v274
        %712 = vmatprep.subr.mxu0 0.0
        %713 = vmatpush1.msra.mxu0 %v275
        %714 = vmatprep.subr.mxu0 0.0
        %715 = vmatpush1.msra.mxu0 %v276
        %716 = vmatprep.subr.mxu0 0.0
        %717 = vmatpush1.msra.mxu0 %v277
        %718 = vmatprep.subr.mxu0 0.0
        %719 = vmatpush1.msra.mxu0 %v278
        %720 = vmatprep.subr.mxu0 0.0
        %721 = vmatpush1.msra.mxu0 %v279
        %722 = vmatprep.subr.mxu0 0.0
        %723 = vmatpush1.msra.mxu0 0.0
        %724 = vmatprep.subr.mxu0 0.0
        %725 = vmatpush1.msra.mxu0 0.0
        %726 = vmatprep.subr.mxu0 0.0
        %727 = vmatpush1.msra.mxu0 0.0
        %728 = vmatprep.subr.mxu0 0.0
        %729 = vmatpush1.msra.mxu0 0.0
        %730 = vmatprep.subr.mxu0 0.0
        %731 = vmatpush1.msra.mxu0 0.0
        %732 = vmatprep.subr.mxu0 0.0
        %733 = vmatpush1.msra.mxu0 0.0
        %734 = vmatprep.subr.mxu0 0.0
        %735 = vmatpush1.msra.mxu0 0.0
        %736 = vmatprep.subr.mxu0 0.0
        %737 = vmatpush1.msra.mxu0 0.0
        %738 = vmatprep.subr.mxu0 0.0
        %739 = vmatpush1.msra.mxu0 0.0
        %740 = vmatprep.subr.mxu0 0.0
        %741 = vmatpush1.msra.mxu0 0.0
        %742 = vmatprep.subr.mxu0 0.0
        %743 = vmatpush1.msra.mxu0 0.0
        %744 = vmatprep.subr.mxu0 0.0
        %745 = vmatpush1.msra.mxu0 0.0
        %746 = vmatprep.subr.mxu0 0.0
        %747 = vmatpush1.msra.mxu0 0.0
        %748 = vmatprep.subr.mxu0 0.0
        %749 = vmatpush1.msra.mxu0 0.0
        %750 = vmatprep.subr.mxu0 0.0
        %751 = vmatpush1.msra.mxu0 0.0
        %752 = vmatprep.subr.mxu0 0.0
        %753 = vmatpush1.msra.mxu0 0.0
        %754 = vmatprep.mubr.f32.mxu0 0.0
        %755 = vmatmul.mubr.f32.gmra.mrb[0].mxu0 %v682
        %v756 = vpop.f32.mrb[0].mxu0
        %v757 = vadd.f32 0.0, %v756
        %v758 = vpop.f32.mrb[0].mxu0
        %759 = vmatprep.mubr.f32.mxu0 0.0
        %760 = vmatmul.mubr.f32.gmra.mrb[0].mxu0 %v683
        %v761 = vpop.f32.mrb[0].mxu0
        %v762 = vadd.f32 0.0, %v761
        %v763 = vpop.f32.mrb[0].mxu0
        %764 = vmatprep.mubr.f32.mxu0 0.0
        %765 = vmatmul.mubr.f32.gmra.mrb[0].mxu0 %v684
        %v766 = vpop.f32.mrb[0].mxu0
        %v767 = vadd.f32 0.0, %v766
        %v768 = vpop.f32.mrb[0].mxu0
        %769 = vmatprep.mubr.f32.mxu0 0.0
        %770 = vmatmul.mubr.f32.gmra.mrb[0].mxu0 %v685
        %v771 = vpop.f32.mrb[0].mxu0
        %v772 = vadd.f32 0.0, %v771
        %v773 = vpop.f32.mrb[0].mxu0
        %774 = vmatprep.mubr.f32.mxu0 0.0
        %775 = vmatmul.mubr.f32.gmra.mrb[0].mxu0 %v686
        %v776 = vpop.f32.mrb[0].mxu0
        %v777 = vadd.f32 0.0, %v776
        %v778 = vpop.f32.mrb[0].mxu0
        %779 = vmatprep.mubr.f32.mxu0 0.0
        %780 = vmatmul.mubr.f32.gmra.mrb[0].mxu0 %v687
        %v781 = vpop.f32.mrb[0].mxu0
        %v782 = vadd.f32 0.0, %v781
        %v783 = vpop.f32.mrb[0].mxu0
        %784 = vmatprep.mubr.f32.mxu0 0.0
        %785 = vmatmul.mubr.f32.gmra.mrb[0].mxu0 %v688
        %v786 = vpop.f32.mrb[0].mxu0
        %v787 = vadd.f32 0.0, %v786
        %v788 = vpop.f32.mrb[0].mxu0
        %789 = vmatprep.mubr.f32.mxu0 0.0
        %790 = vmatmul.mubr.f32.gmra.mrb[0].mxu0 %v689
        %v791 = vpop.f32.mrb[0].mxu0
        %v792 = vadd.f32 0.0, %v791
        %v793 = vpop.f32.mrb[0].mxu0
        %794 = vdwg.mxu0
        %795 = vst [vmem:[%s263] sm:$0xff] %v757
        %796 = vst [vmem:[%s263 + $0x8] sm:$0xff] %v762
        %797 = vst [vmem:[%s263 + $0x10] sm:$0xff] %v767
        %798 = vst [vmem:[%s263 + $0x18] sm:$0xff] %v772
        %799 = vst [vmem:[%s263 + $0x20] sm:$0xff] %v777
        %800 = vst [vmem:[%s263 + $0x28] sm:$0xff] %v782
        %801 = vst [vmem:[%s263 + $0x30] sm:$0xff] %v787
        %802 = vst [vmem:[%s263 + $0x38] sm:$0xff] %v792
        %s803 = sand.u32 %s126, 1
        %s804 = scalar_lea.sflag [#allocation4], %s803
        %s805 = sand.u32 %s126, 1
        %s806 = smul.addr %s805, 64
        %s807 = scalar_lea.vmem [#allocation8], %s806
        // Predicated region
        $region49: #{tpu_custom_call.1} parent=35 // pred_check
          %p808 = pneg %p136
        $region50: #{tpu_custom_call.1} parent=35 // pred_check_branch
          %810 = sbr.rel (%p808) target = $region52
        $region51: #{tpu_custom_call.1} parent=35 // pred_region
          %s812 = ssub.s32 1024, 1024
          %813 = vsyncadd %s804, %s812
          %s814 = smul.addr %s24, 8
          %s815 = smul.addr %s814, 128
          %s816 = scalar_lea.hbm %s4, %s815
          %s817 = sshll.u32 %s807, 4
          %s818 = int_to_ptr.vmem [resolvable:$true] %s817
          %823 = dma.vmem_to_hbm [thread:$0]  %s818, 1024, %s816, %s804, 128, 128, 8
        $region52: #{tpu_custom_call.1} parent=35 // pred_fallthru
          _
      $region36: #{tpu_custom_call.1} parent=5 // pred_fallthru
        _
      %p824 = scmp.le.s32.totalorder 2, %s19
      // Predicated region
      $region53: #{tpu_custom_call.1} parent=5 // pred_check
        %p825 = pneg %p824
      $region54: #{tpu_custom_call.1} parent=5 // pred_check_branch
        %827 = sbr.rel (%p825) target = $region56
      $region55: #{tpu_custom_call.1} parent=5 // pred_region
        %s828 = ssub.s32 %s19, 2
        // Predicated region
        $region57: #{tpu_custom_call.1} parent=55 // pred_check
          %p829 = pneg %p142
        $region58: #{tpu_custom_call.1} parent=55 // pred_check_branch
          %831 = sbr.rel (%p829) target = $region60
        $region59: #{tpu_custom_call.1} parent=55 // pred_region
          %s832 = sand.u32 %s127, 1
          %s833 = scalar_lea.sflag [#allocation4], %s832
          %s834 = sand.u32 %s127, 1
          %s835 = smul.addr %s834, 64
          %s836 = scalar_lea.vmem [#allocation8], %s835
          %837 = dma.done %s833, 1024
        $region60: #{tpu_custom_call.1} parent=55 // pred_fallthru
          _
      $region56: #{tpu_custom_call.1} parent=5 // pred_fallthru
        _
    $region6: #{tpu_custom_call.1} parent=1 // loop_footer
      %s23 = sadd.s32 1, %s19
    $region7: #{tpu_custom_call.1} parent=1 // loop_footer_branch
      %18 = sbr.rel target = $region3
    $region8: #{tpu_custom_call.1} parent=1 // loop_exit
      _
    %838 = vsyncpa [#allocation3], 1
    %s839 = scalar_lea.sflag [#allocation3], 1
    %840 = vsyncpa %s839, 1
    %841 = vsyncpa [#allocation6], 1
    %s842 = scalar_lea.sflag [#allocation6], 1
    %843 = vsyncpa %s842, 1
    %844 = vsyncpa [#allocation4], 1
    %s845 = scalar_lea.sflag [#allocation4], 1
    %846 = vsyncpa %s845, 1

</llo_original>
